<compile_context>
chip_gen: v5e
topology: v5e:2x2
jax: 0.10.0
libtpu: 0.0.40
codegen_flags: <defaults>
</compile_context>

<pallas_src>
import math

import jax
import jax.numpy as jnp
from jax.experimental import pallas as pl
from jax.experimental.pallas import tpu as pltpu

COUT_PAD = 128   # lane-dense padded conv output channels
OUT_PAD = 128    # lane-dense padded width of the (xyz | wpqr) output row


# ----------------------------------------------------------------------------
# Fused Pallas kernel (Bt images per grid step)
# ----------------------------------------------------------------------------

def _make_fused_kernel(Bt, HW):
    inv_hw = 1.0 / float(HW)

    def kernel(x_ref, wc_ref, bc_ref, wfc_ref, bfc_ref, wh_ref, bh_ref, o_ref):
        # ---- 3x3 conv (stride 1, pad 1) + bias + ReLU: ONE wide-K matmul ----
        # x_ref[0] is the im2col slab of Bt stacked images: (Bt*HW, 9*Cin) bf16.
        # Sliced straight off the ref (no f32 unpack, no per-tap re-packs);
        # f32 accumulation on the MXU.
        z = jnp.dot(x_ref[0], wc_ref[...],
                    preferred_element_type=jnp.float32)         # (Bt*HW, 128)
        z = jnp.maximum(z + bc_ref[...], 0.0)                   # f32 epilogue

        # ---- backbone.avgpool = AdaptiveAvgPool2d(1), kept in f32 -----------
        # Free leading-dim split (HW is a multiple of 8 sublanes), then a
        # sublane-axis reduction (XLU slot): no bf16 round-trip of z.
        pooled = jnp.sum(z.reshape(Bt, HW, COUT_PAD), axis=1) * inv_hw  # (Bt,128)

        # ---- backbone.fc -> F.relu -> F.dropout (identity in eval), f32 -----
        feat = jnp.maximum(
            jnp.dot(pooled, wfc_ref[...],
                    preferred_element_type=jnp.float32) + bfc_ref[...], 0.0)
        # TODO(synk): training-mode dropout would need pltpu.prng_seed +
        #             pltpu.stateful_bernoulli; eval mode is the identity.

        # ---- fc_xyz / fc_wpqr fused: one lane-dense matmul + unmasked store -
        o_ref[0] = jnp.dot(feat, wh_ref[...],
                           preferred_element_type=jnp.float32) + bh_ref[...]

    return kernel


# ----------------------------------------------------------------------------
# Wrapper: layout plumbing + pallas_call
# ----------------------------------------------------------------------------

def posenet_cpp_forward(x, params, images_per_step=None):
    """Full PoseNetCpp forward (eval mode): x (B, C, H, W) NCHW -> (B, 6)."""
    B, C, H, W = x.shape
    HW = H * W
    K = 9 * C                                    # im2col contraction width

    conv_w, conv_b = params["conv_w"], params["conv_b"]
    Cout = conv_w.shape[0]
    feat_dim = params["fc_w"].shape[0]
    assert Cout <= COUT_PAD

    # Images per grid step (amortize per-step overhead, fill the MXU M dim).
    if images_per_step is None:
        images_per_step = B if B <= 8 else 8
    Bt = math.gcd(B, images_per_step)
    G = B // Bt

    # --- wrapper-side im2col: lane-dense bf16 slab, 9*Cin on the lane axis ---
    xp = jnp.pad(x, ((0, 0), (0, 0), (1, 1), (1, 1)))            # (B,C,H+2,W+2)
    taps = [xp[:, :, dy:dy + H, dx:dx + W]
            for dy in range(3) for dx in range(3)]               # 9 x (B,C,H,W)
    patches = jnp.stack(taps, axis=1)                            # (B,9,C,H,W)
    slab = jnp.transpose(patches, (0, 3, 4, 1, 2))               # (B,H,W,9,C)
    slab = slab.reshape(G, Bt * HW, K).astype(jnp.bfloat16)      # (G,Bt*HW,9C)

    # --- weights: conv bf16 lane-padded; fc/head stay f32 (no in-kernel casts)
    wc = jnp.transpose(conv_w, (2, 3, 1, 0)).reshape(K, Cout)    # (9C, Cout)
    wc = jnp.pad(wc, ((0, 0), (0, COUT_PAD - Cout))).astype(jnp.bfloat16)
    bc = jnp.pad(conv_b, (0, COUT_PAD - Cout)).reshape(1, COUT_PAD)

    wfc = jnp.pad(params["fc_w"].T, ((0, COUT_PAD - Cout), (0, 0)))  # (128,feat)
    bfc = params["fc_b"].reshape(1, feat_dim)

    wh = jnp.concatenate([params["xyz_w"].T, params["wpqr_w"].T], axis=1)  # (feat,6)
    wh = jnp.pad(wh, ((0, 0), (0, OUT_PAD - 6)))
    bh = jnp.pad(jnp.concatenate([params["xyz_b"], params["wpqr_b"]]),
                 (0, OUT_PAD - 6)).reshape(1, OUT_PAD)

    kernel = _make_fused_kernel(Bt, HW)

    flops = B * (2 * HW * K * COUT_PAD + 2 * HW * COUT_PAD
                 + 2 * COUT_PAD * feat_dim + 2 * feat_dim * OUT_PAD)
    bytes_accessed = int(slab.size * 2 + wc.size * 2 + bc.size * 4
                         + wfc.size * 4 + bfc.size * 4 + wh.size * 4
                         + bh.size * 4 + B * OUT_PAD * 4)

    out = pl.pallas_call(
        kernel,
        out_shape=jax.ShapeDtypeStruct((G, Bt, OUT_PAD), jnp.float32),
        grid_spec=pltpu.PrefetchScalarGridSpec(
            num_scalar_prefetch=0,
            grid=(G,),                                             # Bt images/step
            in_specs=[
                pl.BlockSpec((1, Bt * HW, K), lambda g: (g, 0, 0)),    # im2col slab
                pl.BlockSpec((K, COUT_PAD), lambda g: (0, 0)),         # conv weight
                pl.BlockSpec((1, COUT_PAD), lambda g: (0, 0)),         # conv bias
                pl.BlockSpec((COUT_PAD, feat_dim), lambda g: (0, 0)),  # fc weight
                pl.BlockSpec((1, feat_dim), lambda g: (0, 0)),         # fc bias
                pl.BlockSpec((feat_dim, OUT_PAD), lambda g: (0, 0)),   # head weight
                pl.BlockSpec((1, OUT_PAD), lambda g: (0, 0)),          # head bias
            ],
            out_specs=pl.BlockSpec((1, Bt, OUT_PAD), lambda g: (g, 0, 0)),
        ),
        compiler_params=pltpu.CompilerParams(
            # TODO(synk): switch to pltpu.CORE_PARALLEL on a leading size-2 axis
            #             if profiling shows only one v7x TensorCore active.
            dimension_semantics=("parallel",),
            vmem_limit_bytes=8 * 1024 * 1024,        # actual need ~1 MiB; headroom
        ),
        cost_estimate=pl.CostEstimate(flops=flops, transcendentals=0,
                                      bytes_accessed=bytes_accessed),
    )(slab, wc, bc, wfc, bfc, wh, bh)

    # torch.cat((xyz, wpqr), dim=1): first 6 lanes of the padded output row.
    return out.reshape(B, OUT_PAD)[:, :6]


# ----------------------------------------------------------------------------
# Deterministic parameter init (kaiming_normal_, zero bias)
# ----------------------------------------------------------------------------

def init_params(key, c_in=4, fe_out_planes=32, feat_dim=64):
    def kaiming(k, shape, fan_in):
        std = math.sqrt(2.0) / math.sqrt(fan_in)
        return jax.random.normal(k, shape, dtype=jnp.float32) * std

    ks = jax.random.split(key, 4)
    return {
        # small "resnet" backbone stem: 3x3 conv, c_in -> fe_out_planes
        "conv_w": kaiming(ks[0], (fe_out_planes, c_in, 3, 3), c_in * 9),
        "conv_b": jnp.zeros((fe_out_planes,), jnp.float32),
        # backbone.fc : Linear(fe_out_planes, feat_dim)
        "fc_w": kaiming(ks[1], (feat_dim, fe_out_planes), fe_out_planes),
        "fc_b": jnp.zeros((feat_dim,), jnp.float32),
        # fc_xyz / fc_wpqr : Linear(feat_dim, 3)
        "xyz_w": kaiming(ks[2], (3, feat_dim), feat_dim),
        "xyz_b": jnp.zeros((3,), jnp.float32),
        "wpqr_w": kaiming(ks[3], (3, feat_dim), feat_dim),
        "wpqr_b": jnp.zeros((3,), jnp.float32),
    }


# ----------------------------------------------------------------------------
# Pure-JAX f32 reference (for correctness check)
# ----------------------------------------------------------------------------

def reference_forward(x, params):
    h = jax.lax.conv_general_dilated(
        x, params["conv_w"], window_strides=(1, 1), padding="SAME",
        dimension_numbers=("NCHW", "OIHW", "NCHW"))
    h = jnp.maximum(h + params["conv_b"][None, :, None, None], 0.0)
    h = jnp.mean(h, axis=(2, 3))                                  # (B, C)
    feat = jnp.maximum(h @ params["fc_w"].T + params["fc_b"], 0.0)
    xyz = feat @ params["xyz_w"].T + params["xyz_b"]
    wpqr = feat @ params["wpqr_w"].T + params["wpqr_b"]
    return jnp.concatenate([xyz, wpqr], axis=1)


if __name__ == "__main__":
    key = jax.random.PRNGKey(0)
    k_x, k_p = jax.random.split(key)

    B, C, H, W = 2, 4, 16, 16
    x = jax.random.normal(k_x, (B, C, H, W), dtype=jnp.float32)
    params = init_params(k_p, c_in=C, fe_out_planes=32, feat_dim=64)

    fwd = jax.jit(posenet_cpp_forward)
    out = jax.block_until_ready(fwd(x, params))
    assert out.shape == (B, 6), out.shape

    ref = jax.block_until_ready(reference_forward(x, params))
    # Only remaining rounding source: bf16 conv slab/weight (f32 accumulation,
    # f32 pooling/fc/head) -> tight tolerance vs f32 reference.
    max_err = jnp.max(jnp.abs(out - ref))
    assert jnp.allclose(out, ref, atol=3e-2, rtol=3e-2), \
        f"mismatch: max abs err {max_err}"

    print("KERNEL_OK")
</pallas_src>

<mosaic_0001>
module attributes {stable_mosaic.version = 11 : i64} {
  func.func @kernel(%arg0: i32, %arg1: memref<1x512x36xbf16, #tpu.memory_space<vmem>>, %arg2: memref<36x128xbf16, #tpu.memory_space<vmem>>, %arg3: memref<1x128xf32, #tpu.memory_space<vmem>>, %arg4: memref<128x64xf32, #tpu.memory_space<vmem>>, %arg5: memref<1x64xf32, #tpu.memory_space<vmem>>, %arg6: memref<64x128xf32, #tpu.memory_space<vmem>>, %arg7: memref<1x128xf32, #tpu.memory_space<vmem>>, %arg8: memref<1x2x128xf32, #tpu.memory_space<vmem>>) attributes {dimension_semantics = [#tpu.dimension_semantics<parallel>], iteration_bounds = array<i64: 1>, scalar_prefetch = 0 : i64, scratch_operands = 0 : i64, tpu.core_type = #tpu.core_type<tc>, window_params = [{transform_indices = @transform_0, window_bounds = array<i64: 1, 512, 36>}, {pipeline_mode = #tpu.pipeline_mode<synchronous>, transform_indices = @transform_1, window_bounds = array<i64: 36, 128>}, {pipeline_mode = #tpu.pipeline_mode<synchronous>, transform_indices = @transform_2, window_bounds = array<i64: 1, 128>}, {pipeline_mode = #tpu.pipeline_mode<synchronous>, transform_indices = @transform_3, window_bounds = array<i64: 128, 64>}, {pipeline_mode = #tpu.pipeline_mode<synchronous>, transform_indices = @transform_4, window_bounds = array<i64: 1, 64>}, {pipeline_mode = #tpu.pipeline_mode<synchronous>, transform_indices = @transform_5, window_bounds = array<i64: 64, 128>}, {pipeline_mode = #tpu.pipeline_mode<synchronous>, transform_indices = @transform_6, window_bounds = array<i64: 1, 128>}, {transform_indices = @transform_7, window_bounds = array<i64: 1, 2, 128>}]} {
    %c0 = arith.constant 0 : index
    %c0_0 = arith.constant 0 : index
    %c0_1 = arith.constant 0 : index
    %0 = vector.load %arg1[%c0, %c0_0, %c0_1] : memref<1x512x36xbf16, #tpu.memory_space<vmem>>, vector<1x512x36xbf16>
    %1 = vector.shape_cast %0 : vector<1x512x36xbf16> to vector<512x36xbf16>
    %c0_2 = arith.constant 0 : index
    %c0_3 = arith.constant 0 : index
    %2 = vector.load %arg2[%c0_2, %c0_3] : memref<36x128xbf16, #tpu.memory_space<vmem>>, vector<36x128xbf16>
    %cst = arith.constant dense<0.000000e+00> : vector<512x128xf32>
    %3 = tpu.matmul %1, %2, %cst {dimension_numbers = #tpu.dot_dimension_numbers<[1], [0], [0], [1], [0, 0, 1, 1], [], []>} : vector<512x36xbf16>, vector<36x128xbf16>, vector<512x128xf32> -> vector<512x128xf32>
    %c0_4 = arith.constant 0 : index
    %c0_5 = arith.constant 0 : index
    %4 = vector.load %arg3[%c0_4, %c0_5] : memref<1x128xf32, #tpu.memory_space<vmem>>, vector<1x128xf32>
    %5 = vector.broadcast %4 : vector<1x128xf32> to vector<512x128xf32>
    %6 = arith.addf %3, %5 : vector<512x128xf32>
    %cst_6 = arith.constant 0.000000e+00 : f32
    %7 = vector.broadcast %cst_6 : f32 to vector<512x128xf32>
    %8 = arith.maximumf %6, %7 : vector<512x128xf32>
    %9 = vector.shape_cast %8 : vector<512x128xf32> to vector<2x256x128xf32>
    %cst_7 = arith.constant dense<0.000000e+00> : vector<2x128xf32>
    %10 = vector.multi_reduction <add>, %9, %cst_7 [1] : vector<2x256x128xf32> to vector<2x128xf32>
    %cst_8 = arith.constant 3.906250e-03 : f32
    %11 = vector.broadcast %cst_8 : f32 to vector<2x128xf32>
    %12 = arith.mulf %10, %11 : vector<2x128xf32>
    %c0_9 = arith.constant 0 : index
    %c0_10 = arith.constant 0 : index
    %13 = vector.load %arg4[%c0_9, %c0_10] : memref<128x64xf32, #tpu.memory_space<vmem>>, vector<128x64xf32>
    %cst_11 = arith.constant dense<0.000000e+00> : vector<2x64xf32>
    %14 = tpu.matmul %12, %13, %cst_11 {dimension_numbers = #tpu.dot_dimension_numbers<[1], [0], [0], [1], [0, 0, 1, 1], [], []>} : vector<2x128xf32>, vector<128x64xf32>, vector<2x64xf32> -> vector<2x64xf32>
    %c0_12 = arith.constant 0 : index
    %c0_13 = arith.constant 0 : index
    %15 = vector.load %arg5[%c0_12, %c0_13] : memref<1x64xf32, #tpu.memory_space<vmem>>, vector<1x64xf32>
    %16 = vector.broadcast %15 : vector<1x64xf32> to vector<2x64xf32>
    %17 = arith.addf %14, %16 : vector<2x64xf32>
    %cst_14 = arith.constant 0.000000e+00 : f32
    %18 = vector.broadcast %cst_14 : f32 to vector<2x64xf32>
    %19 = arith.maximumf %17, %18 : vector<2x64xf32>
    %c0_15 = arith.constant 0 : index
    %c0_16 = arith.constant 0 : index
    %20 = vector.load %arg6[%c0_15, %c0_16] : memref<64x128xf32, #tpu.memory_space<vmem>>, vector<64x128xf32>
    %cst_17 = arith.constant dense<0.000000e+00> : vector<2x128xf32>
    %21 = tpu.matmul %19, %20, %cst_17 {dimension_numbers = #tpu.dot_dimension_numbers<[1], [0], [0], [1], [0, 0, 1, 1], [], []>} : vector<2x64xf32>, vector<64x128xf32>, vector<2x128xf32> -> vector<2x128xf32>
    %c0_18 = arith.constant 0 : index
    %c0_19 = arith.constant 0 : index
    %22 = vector.load %arg7[%c0_18, %c0_19] : memref<1x128xf32, #tpu.memory_space<vmem>>, vector<1x128xf32>
    %23 = vector.broadcast %22 : vector<1x128xf32> to vector<2x128xf32>
    %24 = arith.addf %21, %23 : vector<2x128xf32>
    %c0_20 = arith.constant 0 : index
    %c0_21 = arith.constant 0 : index
    %c0_22 = arith.constant 0 : index
    %25 = vector.load %arg8[%c0_20, %c0_21, %c0_22] : memref<1x2x128xf32, #tpu.memory_space<vmem>>, vector<1x2x128xf32>
    %26 = vector.shape_cast %25 : vector<1x2x128xf32> to vector<2x128xf32>
    %27 = vector.shape_cast %24 : vector<2x128xf32> to vector<1x2x128xf32>
    tpu.vector_store %arg8[%c0_20, %c0_21, %c0_22], %27 {strides = array<i32>} : memref<1x2x128xf32, #tpu.memory_space<vmem>>, vector<1x2x128xf32>,
    return
  }
  func.func @transform_0(%arg0: i32) -> (i32, i32, i32) {
    %c0_i32 = arith.constant 0 : i32
    %c0_i32_0 = arith.constant 0 : i32
    %c0_i32_1 = arith.constant 0 : i32
    return %arg0, %c0_i32, %c0_i32_0 : i32, i32, i32
  }
  func.func @transform_1(%arg0: i32) -> (i32, i32) {
    %c0_i32 = arith.constant 0 : i32
    %c0_i32_0 = arith.constant 0 : i32
    %c0_i32_1 = arith.constant 0 : i32
    return %c0_i32, %c0_i32_0 : i32, i32
  }
  func.func @transform_2(%arg0: i32) -> (i32, i32) {
    %c0_i32 = arith.constant 0 : i32
    %c0_i32_0 = arith.constant 0 : i32
    %c0_i32_1 = arith.constant 0 : i32
    return %c0_i32, %c0_i32_0 : i32, i32
  }
  func.func @transform_3(%arg0: i32) -> (i32, i32) {
    %c0_i32 = arith.constant 0 : i32
    %c0_i32_0 = arith.constant 0 : i32
    %c0_i32_1 = arith.constant 0 : i32
    return %c0_i32, %c0_i32_0 : i32, i32
  }
  func.func @transform_4(%arg0: i32) -> (i32, i32) {
    %c0_i32 = arith.constant 0 : i32
    %c0_i32_0 = arith.constant 0 : i32
    %c0_i32_1 = arith.constant 0 : i32
    return %c0_i32, %c0_i32_0 : i32, i32
  }
  func.func @transform_5(%arg0: i32) -> (i32, i32) {
    %c0_i32 = arith.constant 0 : i32
    %c0_i32_0 = arith.constant 0 : i32
    %c0_i32_1 = arith.constant 0 : i32
    return %c0_i32, %c0_i32_0 : i32, i32
  }
  func.func @transform_6(%arg0: i32) -> (i32, i32) {
    %c0_i32 = arith.constant 0 : i32
    %c0_i32_0 = arith.constant 0 : i32
    %c0_i32_1 = arith.constant 0 : i32
    return %c0_i32, %c0_i32_0 : i32, i32
  }
  func.func @transform_7(%arg0: i32) -> (i32, i32, i32) {
    %c0_i32 = arith.constant 0 : i32
    %c0_i32_0 = arith.constant 0 : i32
    %c0_i32_1 = arith.constant 0 : i32
    return %arg0, %c0_i32, %c0_i32_0 : i32, i32, i32
  }
}

</mosaic_0001>

<llo_original>
// kernel: posenet_cpp_forward.1
$region0: #{posenet_cpp_forward.1}
  #allocation0 [shape = 'u32[]', space=smem, size = 0x4, offset = 0x4, fixed_abs, tag = 'smem constant byte address 0x4 - core index']
  #allocation1 [shape = 'u32[72,128]{1,0:T(1,128)}', space=vmem, size = 0x9000, scoped, tag = 'internal scratch']
  %s0 = inlined_call_operand.vmem [shape: bf16[1,512,36], index: 0, kind: input, shape index: {}]
  %s1 = inlined_call_operand.vmem [shape: bf16[36,128], index: 1, kind: input, shape index: {}]
  %s2 = inlined_call_operand.vmem [shape: f32[1,128], index: 2, kind: input, shape index: {}]
  %s3 = inlined_call_operand.vmem [shape: f32[128,64], index: 3, kind: input, shape index: {}]
  %s4 = inlined_call_operand.vmem [shape: f32[1,64], index: 4, kind: input, shape index: {}]
  %s5 = inlined_call_operand.vmem [shape: f32[64,128], index: 5, kind: input, shape index: {}]
  %s6 = inlined_call_operand.vmem [shape: f32[1,128], index: 6, kind: input, shape index: {}]
  %s7 = inlined_call_operand.hbm [shape: f32[1,2,128], index: 7, kind: output, shape index: {}]
  %s8 = sld [smem:[#allocation0]]
  $region38: #{posenet_cpp_forward.1} parent=0
    _
  %s10 = ssub.s32 1, %s8
  %s11 = scalar_select 0, %s10, %s8
  $region1: #{posenet_cpp_forward.1} parent=0
    #allocation2 [shape = 'u8[1024]{0}', space=vmem, size = 0x400, scoped, tag = 'output window, operand 0, single buffered']
    #allocation3 [shape = 's32[1]{0}', space=sflag, size = 0x4, scoped, tag = 'scoped memory for posenet_cpp_forward.1']
    %12 = vsyncpa [#allocation3], 0
    // Predicated region
    $region2: #{posenet_cpp_forward.1} parent=1 // pred_check
      _
    $region3: #{posenet_cpp_forward.1} parent=1 // pred_check_branch
      %14 = sbr.rel (0) target = $region5
    $region4: #{posenet_cpp_forward.1} parent=1 // pred_region
      _
    $region5: #{posenet_cpp_forward.1} parent=1 // pred_fallthru
      _
    // Predicated region
    $region6: #{posenet_cpp_forward.1} parent=1 // pred_check
      _
    $region7: #{posenet_cpp_forward.1} parent=1 // pred_check_branch
      %16 = sbr.rel (0) target = $region9
    $region8: #{posenet_cpp_forward.1} parent=1 // pred_region
      _
    $region9: #{posenet_cpp_forward.1} parent=1 // pred_fallthru
      _
    // Predicated region
    $region10: #{posenet_cpp_forward.1} parent=1 // pred_check
      _
    $region11: #{posenet_cpp_forward.1} parent=1 // pred_check_branch
      %18 = sbr.rel (0) target = $region13
    $region12: #{posenet_cpp_forward.1} parent=1 // pred_region
      _
    $region13: #{posenet_cpp_forward.1} parent=1 // pred_fallthru
      _
    // Predicated region
    $region14: #{posenet_cpp_forward.1} parent=1 // pred_check
      _
    $region15: #{posenet_cpp_forward.1} parent=1 // pred_check_branch
      %20 = sbr.rel (0) target = $region17
    $region16: #{posenet_cpp_forward.1} parent=1 // pred_region
      _
    $region17: #{posenet_cpp_forward.1} parent=1 // pred_fallthru
      _
    // Predicated region
    $region18: #{posenet_cpp_forward.1} parent=1 // pred_check
      _
    $region19: #{posenet_cpp_forward.1} parent=1 // pred_check_branch
      %22 = sbr.rel (0) target = $region21
    $region20: #{posenet_cpp_forward.1} parent=1 // pred_region
      _
    $region21: #{posenet_cpp_forward.1} parent=1 // pred_fallthru
      _
    // Predicated region
    $region22: #{posenet_cpp_forward.1} parent=1 // pred_check
      _
    $region23: #{posenet_cpp_forward.1} parent=1 // pred_check_branch
      %24 = sbr.rel (0) target = $region25
    $region24: #{posenet_cpp_forward.1} parent=1 // pred_region
      _
    $region25: #{posenet_cpp_forward.1} parent=1 // pred_fallthru
      _
    // Predicated region
    $region26: #{posenet_cpp_forward.1} parent=1 // pred_check
      _
    $region27: #{posenet_cpp_forward.1} parent=1 // pred_check_branch
      %26 = sbr.rel (0) target = $region29
    $region28: #{posenet_cpp_forward.1} parent=1 // pred_region
      _
    $region29: #{posenet_cpp_forward.1} parent=1 // pred_fallthru
      _
    %v28 = vld [vmem:[%s0] sm:$0xf]
    %v29 = vld [vmem:[%s0 + $0x4] sm:$0xf]
    %v30 = vld [vmem:[%s0 + $0x8] sm:$0xf]
    %v31 = vld [vmem:[%s0 + $0xc] sm:$0xf]
    %v32 = vld [vmem:[%s0 + $0x10] sm:$0xf]
    %v33 = vld [vmem:[%s0 + $0x14] sm:$0xf]
    %v34 = vld [vmem:[%s0 + $0x18] sm:$0xf]
    %v35 = vld [vmem:[%s0 + $0x1c] sm:$0xf]
    %v36 = vld [vmem:[%s0 + $0x20] sm:$0xf]
    %v37 = vld [vmem:[%s0 + $0x24] sm:$0xf]
    %v38 = vld [vmem:[%s0 + $0x28] sm:$0xf]
    %v39 = vld [vmem:[%s0 + $0x2c] sm:$0xf]
    %v40 = vld [vmem:[%s0 + $0x30] sm:$0xf]
    %v41 = vld [vmem:[%s0 + $0x34] sm:$0xf]
    %v42 = vld [vmem:[%s0 + $0x38] sm:$0xf]
    %v43 = vld [vmem:[%s0 + $0x3c] sm:$0xf]
    %v44 = vld [vmem:[%s0 + $0x40] sm:$0xf]
    %v45 = vld [vmem:[%s0 + $0x44] sm:$0xf]
    %v46 = vld [vmem:[%s0 + $0x48] sm:$0xf]
    %v47 = vld [vmem:[%s0 + $0x4c] sm:$0xf]
    %v48 = vld [vmem:[%s0 + $0x50] sm:$0xf]
    %v49 = vld [vmem:[%s0 + $0x54] sm:$0xf]
    %v50 = vld [vmem:[%s0 + $0x58] sm:$0xf]
    %v51 = vld [vmem:[%s0 + $0x5c] sm:$0xf]
    %v52 = vld [vmem:[%s0 + $0x60] sm:$0xf]
    %v53 = vld [vmem:[%s0 + $0x64] sm:$0xf]
    %v54 = vld [vmem:[%s0 + $0x68] sm:$0xf]
    %v55 = vld [vmem:[%s0 + $0x6c] sm:$0xf]
    %v56 = vld [vmem:[%s0 + $0x70] sm:$0xf]
    %v57 = vld [vmem:[%s0 + $0x74] sm:$0xf]
    %v58 = vld [vmem:[%s0 + $0x78] sm:$0xf]
    %v59 = vld [vmem:[%s0 + $0x7c] sm:$0xf]
    %v60 = vld [vmem:[%s0 + $0x80] sm:$0xf]
    %v61 = vld [vmem:[%s0 + $0x84] sm:$0xf]
    %v62 = vld [vmem:[%s0 + $0x88] sm:$0xf]
    %v63 = vld [vmem:[%s0 + $0x8c] sm:$0xf]
    %v64 = vld [vmem:[%s0 + $0x90] sm:$0xf]
    %v65 = vld [vmem:[%s0 + $0x94] sm:$0xf]
    %v66 = vld [vmem:[%s0 + $0x98] sm:$0xf]
    %v67 = vld [vmem:[%s0 + $0x9c] sm:$0xf]
    %v68 = vld [vmem:[%s0 + $0xa0] sm:$0xf]
    %v69 = vld [vmem:[%s0 + $0xa4] sm:$0xf]
    %v70 = vld [vmem:[%s0 + $0xa8] sm:$0xf]
    %v71 = vld [vmem:[%s0 + $0xac] sm:$0xf]
    %v72 = vld [vmem:[%s0 + $0xb0] sm:$0xf]
    %v73 = vld [vmem:[%s0 + $0xb4] sm:$0xf]
    %v74 = vld [vmem:[%s0 + $0xb8] sm:$0xf]
    %v75 = vld [vmem:[%s0 + $0xbc] sm:$0xf]
    %v76 = vld [vmem:[%s0 + $0xc0] sm:$0xf]
    %v77 = vld [vmem:[%s0 + $0xc4] sm:$0xf]
    %v78 = vld [vmem:[%s0 + $0xc8] sm:$0xf]
    %v79 = vld [vmem:[%s0 + $0xcc] sm:$0xf]
    %v80 = vld [vmem:[%s0 + $0xd0] sm:$0xf]
    %v81 = vld [vmem:[%s0 + $0xd4] sm:$0xf]
    %v82 = vld [vmem:[%s0 + $0xd8] sm:$0xf]
    %v83 = vld [vmem:[%s0 + $0xdc] sm:$0xf]
    %v84 = vld [vmem:[%s0 + $0xe0] sm:$0xf]
    %v85 = vld [vmem:[%s0 + $0xe4] sm:$0xf]
    %v86 = vld [vmem:[%s0 + $0xe8] sm:$0xf]
    %v87 = vld [vmem:[%s0 + $0xec] sm:$0xf]
    %v88 = vld [vmem:[%s0 + $0xf0] sm:$0xf]
    %v89 = vld [vmem:[%s0 + $0xf4] sm:$0xf]
    %v90 = vld [vmem:[%s0 + $0xf8] sm:$0xf]
    %v91 = vld [vmem:[%s0 + $0xfc] sm:$0xf]
    %v92 = vld [vmem:[%s1] sm:$0xf]
    %v93 = vld [vmem:[%s1 + $0x4] sm:$0xf]
    %v94 = vld [vmem:[%s1 + $0x8] sm:$0xf]
    %v95 = vld [vmem:[%s1 + $0xc] sm:$0xf]
    %v96 = vld [vmem:[%s1 + $0x10] sm:$0x3]
    %v97 = vld [vmem:[%s2] sm:$0x1]
    %v99 = vperm.slane %v97, 0
    %v165 = vunpack.c.l.b16 %v28
    %v166 = vunpack.c.l.b16 %v29
    %v167 = vunpack.c.l.b16 %v30
    %v168 = vunpack.c.l.b16 %v31
    %v169 = vunpack.c.l.b16 %v32
    %v170 = vunpack.c.l.b16 %v33
    %v171 = vunpack.c.l.b16 %v34
    %v172 = vunpack.c.l.b16 %v35
    %v173 = vunpack.c.l.b16 %v36
    %v174 = vunpack.c.l.b16 %v37
    %v175 = vunpack.c.l.b16 %v38
    %v176 = vunpack.c.l.b16 %v39
    %v177 = vunpack.c.l.b16 %v40
    %v178 = vunpack.c.l.b16 %v41
    %v179 = vunpack.c.l.b16 %v42
    %v180 = vunpack.c.l.b16 %v43
    %v181 = vunpack.c.l.b16 %v44
    %v182 = vunpack.c.l.b16 %v45
    %v183 = vunpack.c.l.b16 %v46
    %v184 = vunpack.c.l.b16 %v47
    %v185 = vunpack.c.l.b16 %v48
    %v186 = vunpack.c.l.b16 %v49
    %v187 = vunpack.c.l.b16 %v50
    %v188 = vunpack.c.l.b16 %v51
    %v189 = vunpack.c.l.b16 %v52
    %v190 = vunpack.c.l.b16 %v53
    %v191 = vunpack.c.l.b16 %v54
    %v192 = vunpack.c.l.b16 %v55
    %v193 = vunpack.c.l.b16 %v56
    %v194 = vunpack.c.l.b16 %v57
    %v195 = vunpack.c.l.b16 %v58
    %v196 = vunpack.c.l.b16 %v59
    %v197 = vunpack.c.l.b16 %v60
    %v198 = vunpack.c.l.b16 %v61
    %v199 = vunpack.c.l.b16 %v62
    %v200 = vunpack.c.l.b16 %v63
    %v201 = vunpack.c.l.b16 %v64
    %v202 = vunpack.c.l.b16 %v65
    %v203 = vunpack.c.l.b16 %v66
    %v204 = vunpack.c.l.b16 %v67
    %v205 = vunpack.c.l.b16 %v68
    %v206 = vunpack.c.l.b16 %v69
    %v207 = vunpack.c.l.b16 %v70
    %v208 = vunpack.c.l.b16 %v71
    %v209 = vunpack.c.l.b16 %v72
    %v210 = vunpack.c.l.b16 %v73
    %v211 = vunpack.c.l.b16 %v74
    %v212 = vunpack.c.l.b16 %v75
    %v213 = vunpack.c.l.b16 %v76
    %v214 = vunpack.c.l.b16 %v77
    %v215 = vunpack.c.l.b16 %v78
    %v216 = vunpack.c.l.b16 %v79
    %v217 = vunpack.c.l.b16 %v80
    %v218 = vunpack.c.l.b16 %v81
    %v219 = vunpack.c.l.b16 %v82
    %v220 = vunpack.c.l.b16 %v83
    %v221 = vunpack.c.l.b16 %v84
    %v222 = vunpack.c.l.b16 %v85
    %v223 = vunpack.c.l.b16 %v86
    %v224 = vunpack.c.l.b16 %v87
    %v225 = vunpack.c.l.b16 %v88
    %v226 = vunpack.c.l.b16 %v89
    %v227 = vunpack.c.l.b16 %v90
    %v228 = vunpack.c.l.b16 %v91
    %v229 = vpack.c.b16 %v166, %v165
    %v230 = vpack.c.b16 %v168, %v167
    %v231 = vpack.c.b16 %v170, %v169
    %v232 = vpack.c.b16 %v172, %v171
    %v233 = vpack.c.b16 %v174, %v173
    %v234 = vpack.c.b16 %v176, %v175
    %v235 = vpack.c.b16 %v178, %v177
    %v236 = vpack.c.b16 %v180, %v179
    %v237 = vpack.c.b16 %v182, %v181
    %v238 = vpack.c.b16 %v184, %v183
    %v239 = vpack.c.b16 %v186, %v185
    %v240 = vpack.c.b16 %v188, %v187
    %v241 = vpack.c.b16 %v190, %v189
    %v242 = vpack.c.b16 %v192, %v191
    %v243 = vpack.c.b16 %v194, %v193
    %v244 = vpack.c.b16 %v196, %v195
    %v245 = vpack.c.b16 %v198, %v197
    %v246 = vpack.c.b16 %v200, %v199
    %v247 = vpack.c.b16 %v202, %v201
    %v248 = vpack.c.b16 %v204, %v203
    %v249 = vpack.c.b16 %v206, %v205
    %v250 = vpack.c.b16 %v208, %v207
    %v251 = vpack.c.b16 %v210, %v209
    %v252 = vpack.c.b16 %v212, %v211
    %v253 = vpack.c.b16 %v214, %v213
    %v254 = vpack.c.b16 %v216, %v215
    %v255 = vpack.c.b16 %v218, %v217
    %v256 = vpack.c.b16 %v220, %v219
    %v257 = vpack.c.b16 %v222, %v221
    %v258 = vpack.c.b16 %v224, %v223
    %v259 = vpack.c.b16 %v226, %v225
    %v260 = vpack.c.b16 %v228, %v227
    %v266 = vunpack.c.l.b16 %v92
    %v267 = vunpack.c.l.b16 %v93
    %v268 = vunpack.c.l.b16 %v94
    %v269 = vunpack.c.l.b16 %v95
    %v270 = vunpack.c.l.b16 %v96
    %v271 = vpack.c.b16 %v267, %v266
    %v272 = vpack.c.b16 %v269, %v268
    %v273 = vpack.c.b16 %v270, %v270
    %vm276 = vcmask 293888
    %v278 = vsel %vm276, %v229, 0
    %v281 = vsel %vm276, %v230, 0
    %v284 = vsel %vm276, %v231, 0
    %v287 = vsel %vm276, %v232, 0
    %v290 = vsel %vm276, %v233, 0
    %v293 = vsel %vm276, %v234, 0
    %v296 = vsel %vm276, %v235, 0
    %v299 = vsel %vm276, %v236, 0
    %v302 = vsel %vm276, %v237, 0
    %v305 = vsel %vm276, %v238, 0
    %v308 = vsel %vm276, %v239, 0
    %v311 = vsel %vm276, %v240, 0
    %v314 = vsel %vm276, %v241, 0
    %v317 = vsel %vm276, %v242, 0
    %v320 = vsel %vm276, %v243, 0
    %v323 = vsel %vm276, %v244, 0
    %v326 = vsel %vm276, %v245, 0
    %v329 = vsel %vm276, %v246, 0
    %v332 = vsel %vm276, %v247, 0
    %v335 = vsel %vm276, %v248, 0
    %v338 = vsel %vm276, %v249, 0
    %v341 = vsel %vm276, %v250, 0
    %v344 = vsel %vm276, %v251, 0
    %v347 = vsel %vm276, %v252, 0
    %v350 = vsel %vm276, %v253, 0
    %v353 = vsel %vm276, %v254, 0
    %v356 = vsel %vm276, %v255, 0
    %v359 = vsel %vm276, %v256, 0
    %v362 = vsel %vm276, %v257, 0
    %v365 = vsel %vm276, %v258, 0
    %v368 = vsel %vm276, %v259, 0
    %v371 = vsel %vm276, %v260, 0
    %vm373 = vcmask 1041408
    %v375 = vsel %vm373, %v273, 0
    %377 = vmatpush.bf16.msra.mxu0 0
    %378 = vmatpush.bf16.msra.mxu0 0
    %379 = vmatpush.bf16.msra.mxu0 0
    %380 = vmatpush.bf16.msra.mxu0 0
    %381 = vmatpush.bf16.msra.mxu0 0
    %382 = vmatpush.bf16.msra.mxu0 %v375
    %383 = vmatpush.bf16.msra.mxu0 %v272
    %384 = vmatpush.bf16.msra.mxu0 %v271
    %385 = vmatmul.bf16.gmra.mxu0 %v278
    %v386 = vpop.f32.mrf.mxu0
    %v387 = vadd.f32 %v99, %v386
    %v388 = vpop.f32.mrf.mxu0
    %v389 = vadd.f32 %v99, %v388
    %390 = vmatmul.bf16.gmra.mxu0 %v281
    %v391 = vpop.f32.mrf.mxu0
    %v392 = vadd.f32 %v99, %v391
    %v393 = vpop.f32.mrf.mxu0
    %v394 = vadd.f32 %v99, %v393
    %395 = vmatmul.bf16.gmra.mxu0 %v284
    %v396 = vpop.f32.mrf.mxu0
    %v397 = vadd.f32 %v99, %v396
    %v398 = vpop.f32.mrf.mxu0
    %v399 = vadd.f32 %v99, %v398
    %400 = vmatmul.bf16.gmra.mxu0 %v287
    %v401 = vpop.f32.mrf.mxu0
    %v402 = vadd.f32 %v99, %v401
    %v403 = vpop.f32.mrf.mxu0
    %v404 = vadd.f32 %v99, %v403
    %405 = vmatmul.bf16.gmra.mxu0 %v290
    %v406 = vpop.f32.mrf.mxu0
    %v407 = vadd.f32 %v99, %v406
    %v408 = vpop.f32.mrf.mxu0
    %v409 = vadd.f32 %v99, %v408
    %410 = vmatmul.bf16.gmra.mxu0 %v293
    %v411 = vpop.f32.mrf.mxu0
    %v412 = vadd.f32 %v99, %v411
    %v413 = vpop.f32.mrf.mxu0
    %v414 = vadd.f32 %v99, %v413
    %415 = vmatmul.bf16.gmra.mxu0 %v296
    %v416 = vpop.f32.mrf.mxu0
    %v417 = vadd.f32 %v99, %v416
    %v418 = vpop.f32.mrf.mxu0
    %v419 = vadd.f32 %v99, %v418
    %420 = vmatmul.bf16.gmra.mxu0 %v299
    %v421 = vpop.f32.mrf.mxu0
    %v422 = vadd.f32 %v99, %v421
    %v423 = vpop.f32.mrf.mxu0
    %v424 = vadd.f32 %v99, %v423
    %425 = vmatmul.bf16.gmra.mxu0 %v302
    %v426 = vpop.f32.mrf.mxu0
    %v427 = vadd.f32 %v99, %v426
    %v428 = vpop.f32.mrf.mxu0
    %v429 = vadd.f32 %v99, %v428
    %430 = vmatmul.bf16.gmra.mxu0 %v305
    %v431 = vpop.f32.mrf.mxu0
    %v432 = vadd.f32 %v99, %v431
    %v433 = vpop.f32.mrf.mxu0
    %v434 = vadd.f32 %v99, %v433
    %435 = vmatmul.bf16.gmra.mxu0 %v308
    %v436 = vpop.f32.mrf.mxu0
    %v437 = vadd.f32 %v99, %v436
    %v438 = vpop.f32.mrf.mxu0
    %v439 = vadd.f32 %v99, %v438
    %440 = vmatmul.bf16.gmra.mxu0 %v311
    %v441 = vpop.f32.mrf.mxu0
    %v442 = vadd.f32 %v99, %v441
    %v443 = vpop.f32.mrf.mxu0
    %v444 = vadd.f32 %v99, %v443
    %445 = vmatmul.bf16.gmra.mxu0 %v314
    %v446 = vpop.f32.mrf.mxu0
    %v447 = vadd.f32 %v99, %v446
    %v448 = vpop.f32.mrf.mxu0
    %v449 = vadd.f32 %v99, %v448
    %450 = vmatmul.bf16.gmra.mxu0 %v317
    %v451 = vpop.f32.mrf.mxu0
    %v452 = vadd.f32 %v99, %v451
    %v453 = vpop.f32.mrf.mxu0
    %v454 = vadd.f32 %v99, %v453
    %455 = vmatmul.bf16.gmra.mxu0 %v320
    %v456 = vpop.f32.mrf.mxu0
    %v457 = vadd.f32 %v99, %v456
    %v458 = vpop.f32.mrf.mxu0
    %v459 = vadd.f32 %v99, %v458
    %460 = vmatmul.bf16.gmra.mxu0 %v323
    %v461 = vpop.f32.mrf.mxu0
    %v462 = vadd.f32 %v99, %v461
    %v463 = vpop.f32.mrf.mxu0
    %v464 = vadd.f32 %v99, %v463
    %465 = vmatmul.bf16.gmra.mxu0 %v326
    %v466 = vpop.f32.mrf.mxu0
    %v467 = vadd.f32 %v99, %v466
    %v468 = vpop.f32.mrf.mxu0
    %v469 = vadd.f32 %v99, %v468
    %470 = vmatmul.bf16.gmra.mxu0 %v329
    %v471 = vpop.f32.mrf.mxu0
    %v472 = vadd.f32 %v99, %v471
    %v473 = vpop.f32.mrf.mxu0
    %v474 = vadd.f32 %v99, %v473
    %475 = vmatmul.bf16.gmra.mxu0 %v332
    %v476 = vpop.f32.mrf.mxu0
    %v477 = vadd.f32 %v99, %v476
    %v478 = vpop.f32.mrf.mxu0
    %v479 = vadd.f32 %v99, %v478
    %480 = vmatmul.bf16.gmra.mxu0 %v335
    %v481 = vpop.f32.mrf.mxu0
    %v482 = vadd.f32 %v99, %v481
    %v483 = vpop.f32.mrf.mxu0
    %v484 = vadd.f32 %v99, %v483
    %485 = vmatmul.bf16.gmra.mxu0 %v338
    %v486 = vpop.f32.mrf.mxu0
    %v487 = vadd.f32 %v99, %v486
    %v488 = vpop.f32.mrf.mxu0
    %v489 = vadd.f32 %v99, %v488
    %490 = vmatmul.bf16.gmra.mxu0 %v341
    %v491 = vpop.f32.mrf.mxu0
    %v492 = vadd.f32 %v99, %v491
    %v493 = vpop.f32.mrf.mxu0
    %v494 = vadd.f32 %v99, %v493
    %495 = vmatmul.bf16.gmra.mxu0 %v344
    %v496 = vpop.f32.mrf.mxu0
    %v497 = vadd.f32 %v99, %v496
    %v498 = vpop.f32.mrf.mxu0
    %v499 = vadd.f32 %v99, %v498
    %500 = vmatmul.bf16.gmra.mxu0 %v347
    %v501 = vpop.f32.mrf.mxu0
    %v502 = vadd.f32 %v99, %v501
    %v503 = vpop.f32.mrf.mxu0
    %v504 = vadd.f32 %v99, %v503
    %505 = vmatmul.bf16.gmra.mxu0 %v350
    %v506 = vpop.f32.mrf.mxu0
    %v507 = vadd.f32 %v99, %v506
    %v508 = vpop.f32.mrf.mxu0
    %v509 = vadd.f32 %v99, %v508
    %510 = vmatmul.bf16.gmra.mxu0 %v353
    %v511 = vpop.f32.mrf.mxu0
    %v512 = vadd.f32 %v99, %v511
    %v513 = vpop.f32.mrf.mxu0
    %v514 = vadd.f32 %v99, %v513
    %515 = vmatmul.bf16.gmra.mxu0 %v356
    %v516 = vpop.f32.mrf.mxu0
    %v517 = vadd.f32 %v99, %v516
    %v518 = vpop.f32.mrf.mxu0
    %v519 = vadd.f32 %v99, %v518
    %520 = vmatmul.bf16.gmra.mxu0 %v359
    %v521 = vpop.f32.mrf.mxu0
    %v522 = vadd.f32 %v99, %v521
    %v523 = vpop.f32.mrf.mxu0
    %v524 = vadd.f32 %v99, %v523
    %525 = vmatmul.bf16.gmra.mxu0 %v362
    %v526 = vpop.f32.mrf.mxu0
    %v527 = vadd.f32 %v99, %v526
    %v528 = vpop.f32.mrf.mxu0
    %v529 = vadd.f32 %v99, %v528
    %530 = vmatmul.bf16.gmra.mxu0 %v365
    %v531 = vpop.f32.mrf.mxu0
    %v532 = vadd.f32 %v99, %v531
    %v533 = vpop.f32.mrf.mxu0
    %v534 = vadd.f32 %v99, %v533
    %535 = vmatmul.bf16.gmra.mxu0 %v368
    %v536 = vpop.f32.mrf.mxu0
    %v537 = vadd.f32 %v99, %v536
    %v538 = vpop.f32.mrf.mxu0
    %v539 = vadd.f32 %v99, %v538
    %540 = vmatmul.bf16.gmra.mxu0 %v371
    %v541 = vpop.f32.mrf.mxu0
    %v542 = vadd.f32 %v99, %v541
    %v543 = vpop.f32.mrf.mxu0
    %v544 = vadd.f32 %v99, %v543
    %545 = vdwg.mxu0
    %v546 = vmax.f32 %v387, 0.0
    %v547 = vmax.f32 %v389, 0.0
    %v548 = vmax.f32 %v392, 0.0
    %v549 = vmax.f32 %v394, 0.0
    %v550 = vmax.f32 %v397, 0.0
    %v551 = vmax.f32 %v399, 0.0
    %v552 = vmax.f32 %v402, 0.0
    %v553 = vmax.f32 %v404, 0.0
    %v554 = vmax.f32 %v407, 0.0
    %v555 = vmax.f32 %v409, 0.0
    %v556 = vmax.f32 %v412, 0.0
    %v557 = vmax.f32 %v414, 0.0
    %v558 = vmax.f32 %v417, 0.0
    %v559 = vmax.f32 %v419, 0.0
    %v560 = vmax.f32 %v422, 0.0
    %v561 = vmax.f32 %v424, 0.0
    %v562 = vmax.f32 %v427, 0.0
    %v563 = vmax.f32 %v429, 0.0
    %v564 = vmax.f32 %v432, 0.0
    %v565 = vmax.f32 %v434, 0.0
    %v566 = vmax.f32 %v437, 0.0
    %v567 = vmax.f32 %v439, 0.0
    %v568 = vmax.f32 %v442, 0.0
    %v569 = vmax.f32 %v444, 0.0
    %v570 = vmax.f32 %v447, 0.0
    %v571 = vmax.f32 %v449, 0.0
    %v572 = vmax.f32 %v452, 0.0
    %v573 = vmax.f32 %v454, 0.0
    %v574 = vmax.f32 %v457, 0.0
    %v575 = vmax.f32 %v459, 0.0
    %v576 = vmax.f32 %v462, 0.0
    %v577 = vmax.f32 %v464, 0.0
    %v578 = vmax.f32 %v467, 0.0
    %v579 = vmax.f32 %v469, 0.0
    %v580 = vmax.f32 %v472, 0.0
    %v581 = vmax.f32 %v474, 0.0
    %v582 = vmax.f32 %v477, 0.0
    %v583 = vmax.f32 %v479, 0.0
    %v584 = vmax.f32 %v482, 0.0
    %v585 = vmax.f32 %v484, 0.0
    %v586 = vmax.f32 %v487, 0.0
    %v587 = vmax.f32 %v489, 0.0
    %v588 = vmax.f32 %v492, 0.0
    %v589 = vmax.f32 %v494, 0.0
    %v590 = vmax.f32 %v497, 0.0
    %v591 = vmax.f32 %v499, 0.0
    %v592 = vmax.f32 %v502, 0.0
    %v593 = vmax.f32 %v504, 0.0
    %v594 = vmax.f32 %v507, 0.0
    %v595 = vmax.f32 %v509, 0.0
    %v596 = vmax.f32 %v512, 0.0
    %v597 = vmax.f32 %v514, 0.0
    %v598 = vmax.f32 %v517, 0.0
    %v599 = vmax.f32 %v519, 0.0
    %v600 = vmax.f32 %v522, 0.0
    %v601 = vmax.f32 %v524, 0.0
    %v602 = vmax.f32 %v527, 0.0
    %v603 = vmax.f32 %v529, 0.0
    %v604 = vmax.f32 %v532, 0.0
    %v605 = vmax.f32 %v534, 0.0
    %v606 = vmax.f32 %v537, 0.0
    %v607 = vmax.f32 %v539, 0.0
    %v608 = vmax.f32 %v542, 0.0
    %v609 = vmax.f32 %v544, 0.0
    %v610 = vadd.f32 %v546, %v547
    %v611 = vadd.f32 %v610, %v548
    %v612 = vadd.f32 %v611, %v549
    %v613 = vadd.f32 %v612, %v550
    %v614 = vadd.f32 %v613, %v551
    %v615 = vadd.f32 %v614, %v552
    %v616 = vadd.f32 %v615, %v553
    %v617 = vadd.f32 %v616, %v554
    %v618 = vadd.f32 %v617, %v555
    %v619 = vadd.f32 %v618, %v556
    %v620 = vadd.f32 %v619, %v557
    %v621 = vadd.f32 %v620, %v558
    %v622 = vadd.f32 %v621, %v559
    %v623 = vadd.f32 %v622, %v560
    %v624 = vadd.f32 %v623, %v561
    %v625 = vadd.f32 %v624, %v562
    %v626 = vadd.f32 %v625, %v563
    %v627 = vadd.f32 %v626, %v564
    %v628 = vadd.f32 %v627, %v565
    %v629 = vadd.f32 %v628, %v566
    %v630 = vadd.f32 %v629, %v567
    %v631 = vadd.f32 %v630, %v568
    %v632 = vadd.f32 %v631, %v569
    %v633 = vadd.f32 %v632, %v570
    %v634 = vadd.f32 %v633, %v571
    %v635 = vadd.f32 %v634, %v572
    %v636 = vadd.f32 %v635, %v573
    %v637 = vadd.f32 %v636, %v574
    %v638 = vadd.f32 %v637, %v575
    %v639 = vadd.f32 %v638, %v576
    %v640 = vadd.f32 %v639, %v577
    %v641 = vrot.slane %v640, 4
    %v642 = vadd.f32 %v640, %v641
    %v643 = vrot.slane %v642, 2
    %v644 = vadd.f32 %v642, %v643
    %v645 = vrot.slane %v644, 1
    %v646 = vadd.f32 %v644, %v645
    %v647 = vadd.f32 %v578, %v579
    %v648 = vadd.f32 %v647, %v580
    %v649 = vadd.f32 %v648, %v581
    %v650 = vadd.f32 %v649, %v582
    %v651 = vadd.f32 %v650, %v583
    %v652 = vadd.f32 %v651, %v584
    %v653 = vadd.f32 %v652, %v585
    %v654 = vadd.f32 %v653, %v586
    %v655 = vadd.f32 %v654, %v587
    %v656 = vadd.f32 %v655, %v588
    %v657 = vadd.f32 %v656, %v589
    %v658 = vadd.f32 %v657, %v590
    %v659 = vadd.f32 %v658, %v591
    %v660 = vadd.f32 %v659, %v592
    %v661 = vadd.f32 %v660, %v593
    %v662 = vadd.f32 %v661, %v594
    %v663 = vadd.f32 %v662, %v595
    %v664 = vadd.f32 %v663, %v596
    %v665 = vadd.f32 %v664, %v597
    %v666 = vadd.f32 %v665, %v598
    %v667 = vadd.f32 %v666, %v599
    %v668 = vadd.f32 %v667, %v600
    %v669 = vadd.f32 %v668, %v601
    %v670 = vadd.f32 %v669, %v602
    %v671 = vadd.f32 %v670, %v603
    %v672 = vadd.f32 %v671, %v604
    %v673 = vadd.f32 %v672, %v605
    %v674 = vadd.f32 %v673, %v606
    %v675 = vadd.f32 %v674, %v607
    %v676 = vadd.f32 %v675, %v608
    %v677 = vadd.f32 %v676, %v609
    %v678 = vrot.slane %v677, 4
    %v679 = vadd.f32 %v677, %v678
    %v680 = vrot.slane %v679, 2
    %v681 = vadd.f32 %v679, %v680
    %v682 = vrot.slane %v681, 1
    %v683 = vadd.f32 %v681, %v682
    %v684 = vmul.f32 %v646, 0.00390625
    %v685 = vmul.f32 %v683, 0.00390625
    %v686 = vld [vmem:[%s3] sm:$0xff]
    %v687 = vld [vmem:[%s3 + $0x8] sm:$0xff]
    %v688 = vld [vmem:[%s3 + $0x10] sm:$0xff]
    %v689 = vld [vmem:[%s3 + $0x18] sm:$0xff]
    %v690 = vld [vmem:[%s3 + $0x20] sm:$0xff]
    %v691 = vld [vmem:[%s3 + $0x28] sm:$0xff]
    %v692 = vld [vmem:[%s3 + $0x30] sm:$0xff]
    %v693 = vld [vmem:[%s3 + $0x38] sm:$0xff]
    %v694 = vld [vmem:[%s3 + $0x40] sm:$0xff]
    %v695 = vld [vmem:[%s3 + $0x48] sm:$0xff]
    %v696 = vld [vmem:[%s3 + $0x50] sm:$0xff]
    %v697 = vld [vmem:[%s3 + $0x58] sm:$0xff]
    %v698 = vld [vmem:[%s3 + $0x60] sm:$0xff]
    %v699 = vld [vmem:[%s3 + $0x68] sm:$0xff]
    %v700 = vld [vmem:[%s3 + $0x70] sm:$0xff]
    %v701 = vld [vmem:[%s3 + $0x78] sm:$0xff]
    %v702 = vld [vmem:[%s4] sm:$0x1]
    %v704 = vperm.slane %v702, 0
    %vm708 = vcmask 1041409
    %v709 = vsel %vm708, %v685, %v684
    %711 = vmatpush.msra.mxu0 %v701
    %712 = vmatpush.msra.mxu0 %v700
    %713 = vmatpush.msra.mxu0 %v699
    %714 = vmatpush.msra.mxu0 %v698
    %715 = vmatpush.msra.mxu0 %v697
    %716 = vmatpush.msra.mxu0 %v696
    %717 = vmatpush.msra.mxu0 %v695
    %718 = vmatpush.msra.mxu0 %v694
    %719 = vmatpush.msra.mxu0 %v693
    %720 = vmatpush.msra.mxu0 %v692
    %721 = vmatpush.msra.mxu0 %v691
    %722 = vmatpush.msra.mxu0 %v690
    %723 = vmatpush.msra.mxu0 %v689
    %724 = vmatpush.msra.mxu0 %v688
    %725 = vmatpush.msra.mxu0 %v687
    %726 = vmatpush.msra.mxu0 %v686
    %727 = vmatmul.f32.gmra.mxu0 %v709
    %v728 = vpop.f32.mrf.mxu0
    %v729 = vadd.f32 %v704, %v728
    %730 = vdwg.mxu0
    %v731 = vmax.f32 %v729, 0.0
    %v732 = vld [vmem:[%s5] sm:$0xff]
    %v733 = vld [vmem:[%s5 + $0x8] sm:$0xff]
    %v734 = vld [vmem:[%s5 + $0x10] sm:$0xff]
    %v735 = vld [vmem:[%s5 + $0x18] sm:$0xff]
    %v736 = vld [vmem:[%s5 + $0x20] sm:$0xff]
    %v737 = vld [vmem:[%s5 + $0x28] sm:$0xff]
    %v738 = vld [vmem:[%s5 + $0x30] sm:$0xff]
    %v739 = vld [vmem:[%s5 + $0x38] sm:$0xff]
    %v740 = vld [vmem:[%s6] sm:$0x1]
    %v742 = vperm.slane %v740, 0
    %vm744 = vcmask 523264
    %v746 = vsel %vm744, %v731, 0
    %748 = vmatpush.msra.mxu0 0.0
    %749 = vmatpush.msra.mxu0 0.0
    %750 = vmatpush.msra.mxu0 0.0
    %751 = vmatpush.msra.mxu0 0.0
    %752 = vmatpush.msra.mxu0 0.0
    %753 = vmatpush.msra.mxu0 0.0
    %754 = vmatpush.msra.mxu0 0.0
    %755 = vmatpush.msra.mxu0 0.0
    %756 = vmatpush.msra.mxu0 %v739
    %757 = vmatpush.msra.mxu0 %v738
    %758 = vmatpush.msra.mxu0 %v737
    %759 = vmatpush.msra.mxu0 %v736
    %760 = vmatpush.msra.mxu0 %v735
    %761 = vmatpush.msra.mxu0 %v734
    %762 = vmatpush.msra.mxu0 %v733
    %763 = vmatpush.msra.mxu0 %v732
    %764 = vmatmul.f32.gmra.mxu0 %v746
    %v765 = vpop.f32.mrf.mxu0
    %v766 = vadd.f32 %v742, %v765
    %767 = vdwg.mxu0
    %768 = vst [vmem:[#allocation2] sm:$0x3] %v766
    // Predicated region
    $region30: #{posenet_cpp_forward.1} parent=1 // pred_check
      _
    $region31: #{posenet_cpp_forward.1} parent=1 // pred_check_branch
      %770 = sbr.rel (0) target = $region33
    $region32: #{posenet_cpp_forward.1} parent=1 // pred_region
      %772 = vsyncadd [#allocation3], 0
      %s774 = sshll.u32 [#allocation2], 4
      %s775 = int_to_ptr.vmem [resolvable:$true] %s774
      %s776 = sshll.u32 %s7, 4
      %s777 = int_to_ptr.hbm [resolvable:$true] %s776
      %779 = dma.vmem_to_hbm [thread:$0]  %s775, 32, %s777, [#allocation3]
    $region33: #{posenet_cpp_forward.1} parent=1 // pred_fallthru
      _
    // Predicated region
    $region34: #{posenet_cpp_forward.1} parent=1 // pred_check
      _
    $region35: #{posenet_cpp_forward.1} parent=1 // pred_check_branch
      %781 = sbr.rel (0) target = $region37
    $region36: #{posenet_cpp_forward.1} parent=1 // pred_region
      %783 = dma.done [#allocation3], 32
    $region37: #{posenet_cpp_forward.1} parent=1 // pred_fallthru
      _
    %784 = vsyncpa [#allocation3], 1

</llo_original>
